<compile_context>
chip_gen: v6e
topology: v6e:2x2x1
jax: 0.10.0
libtpu: 0.0.40
codegen_flags: <defaults>
</compile_context>

<pallas_src>
import functools

import jax
import jax.numpy as jnp
from jax import lax
from jax.experimental import pallas as pl
from jax.experimental.pallas import tpu as pltpu


def _round_up(n, m):
    return ((n + m - 1) // m) * m


def _block_diag(w):
    """w: (G, K, N) per-group 1x1-conv weights -> dense (G*K, G*N) block-diag."""
    G, K, N = w.shape
    out = jnp.zeros((G * K, G * N), w.dtype)
    for g in range(G):  # G is a small static int
        out = out.at[g * K:(g + 1) * K, g * N:(g + 1) * N].set(w[g])
    return out


def _softmax_lastdim(s, approx_recip):
    m = jnp.max(s, axis=-1, keepdims=True)
    e = jnp.exp(s - m)
    denom = jnp.sum(e, axis=-1, keepdims=True)
    return e * pl.reciprocal(denom, approx=approx_recip)


def _layernorm_padded(x, gamma, beta, n_true, n_pad, eps):
    """LayerNorm over the last dim of f32 `x` whose trailing `n_pad` lanes are
    zero padding.  Mean/var use the TRUE channel count; variance is the
    two-pass (x-mean)^2 form with an exact correction for the padded lanes
    (each padded lane contributes mean^2 to the raw sum of squares).  The
    affine is applied in gamma/beta's dtype (bf16 on the fast path) so only the
    statistics stay in f32."""
    inv_n = 1.0 / float(n_true)
    mean = jnp.sum(x, axis=-1, keepdims=True) * inv_n
    xc = x - mean                                   # padded lanes become -mean
    ssq = jnp.sum(xc * xc, axis=-1, keepdims=True)
    if n_pad:
        ssq = ssq - float(n_pad) * (mean * mean)    # exact pad correction
    var = ssq * inv_n
    xn = (xc * lax.rsqrt(var + eps)).astype(gamma.dtype)
    return xn * gamma + beta                        # padded lanes -> 0 (gamma/beta pad = 0)


def _adapter_kernel(x_ref, rep_ref, repv_ref, wd_ref, wu_ref,
                    bn1b_ref, bn2b_ref, lnbg_ref, lnbb_ref, lnpg_ref, lnpb_ref,
                    o_ref, *, d_true, d_pad, dout_true, dout_pad,
                    approx_recip, eps=1e-5):
    x_lo = x_ref[0]       # (Lt, Dp)  compute dtype
    rep = rep_ref[0]      # (T,  Dp)  compute dtype (precomputed token<-visual attention)
    rep_v = repv_ref[0]   # (T,  Dp)  compute dtype (= gate_av * rep, value matrix)
    cdt = x_lo.dtype

    # ---- x <- token cross attention (lane-dim contraction, no transpose) ----
    dn_last = (((1,), (1,)), ((), ()))
    s2 = lax.dot_general(x_lo, rep, dn_last,
                         preferred_element_type=jnp.float32)          # (Lt, T)
    p2 = _softmax_lastdim(s2, approx_recip)
    xh = x_lo.astype(jnp.float32) + jnp.dot(
        p2.astype(cdt), rep_v, preferred_element_type=jnp.float32)    # (Lt, Dp) f32

    # ---- LayerNorm (before): f32 stats over the true channel count ----------
    xn = _layernorm_padded(xh, lnbg_ref[...], lnbb_ref[...],
                           d_true, d_pad - d_true, eps)               # (Lt, Dp) cdt

    # ---- grouped 1x1 down-conv as one dense block-diag matmul + BN1 + ReLU --
    # (BN1 scale folded into the weight columns; bias/ReLU in compute dtype)
    z = jnp.dot(xn, wd_ref[...], preferred_element_type=jnp.float32)
    z = jnp.maximum(z.astype(cdt) + bn1b_ref[...], 0.0)               # (Lt, Cdp) cdt

    # ---- grouped 1x1 up-conv as one dense block-diag matmul + BN2 -----------
    y = jnp.dot(z, wu_ref[...], preferred_element_type=jnp.float32)
    y = y + bn2b_ref[...]                                             # f32 (feeds f32 LN stats)

    # ---- LayerNorm (post): output gate folded into gamma/beta ---------------
    out = _layernorm_padded(y, lnpg_ref[...], lnpb_ref[...],
                            dout_true, dout_pad - dout_true, eps)
    o_ref[0] = out.astype(o_ref.dtype)     # lane-dense (128-multiple) store


def visual_adapter(x, vis_token, params, *, num_groups, l_tile=1024,
                   compute_dtype=jnp.bfloat16, out_dtype=None,
                   slice_output=True):
    """x: [B, L, D] channels-last, vis_token: [B, Lv, D].
    Returns [B, L, Dout] in out_dtype (default: compute_dtype)."""
    B, L, D = x.shape
    _, Lv, _ = vis_token.shape
    T = params["my_tokens"].shape[0]
    G = num_groups
    Cd = G * params["w_down"].shape[-1]
    Dout = G * params["w_up"].shape[-1]
    f32 = jnp.float32
    out_dtype = compute_dtype if out_dtype is None else out_dtype

    Dp = _round_up(D, 128)
    Cdp = _round_up(Cd, 128)
    Doutp = _round_up(Dout, 128)

    def pad_last(a, tgt):
        p = tgt - a.shape[-1]
        return a if p == 0 else jnp.pad(a, [(0, 0)] * (a.ndim - 1) + [(0, p)])

    # ---- hoisted token<-visual cross attention (grid-invariant along L) -----
    hp = lax.Precision.HIGHEST
    tok = params["my_tokens"].astype(f32)                        # (T, D)
    vis_f = vis_token.astype(f32)                                # (B, Lv, D)
    s1 = jnp.einsum("td,bld->btl", tok, vis_f, precision=hp)     # (B, T, Lv)
    p1 = jax.nn.softmax(s1, axis=-1)
    rep = tok[None] + jnp.einsum("btl,bld->btd", p1, vis_f, precision=hp)  # (B, T, D)
    rep_v = params["gate_av"].astype(f32) * rep                  # gate_av folded into values
    rep_p = pad_last(rep, Dp).astype(compute_dtype)
    repv_p = pad_last(rep_v, Dp).astype(compute_dtype)

    # ---- dense block-diagonal 1x1-conv weights, eval-mode BN scales folded --
    wd = _block_diag(params["w_down"]) * params["bn1_scale"].reshape(1, Cd)
    wd = jnp.pad(wd, ((0, Dp - D), (0, Cdp - Cd))).astype(compute_dtype)
    wu = _block_diag(params["w_up"]) * params["bn2_scale"].reshape(1, Dout)
    wu = jnp.pad(wu, ((0, Cdp - Cd), (0, Doutp - Dout))).astype(compute_dtype)

    bn1b = pad_last(params["bn1_bias"].reshape(1, Cd), Cdp).astype(compute_dtype)
    bn2b = pad_last(params["bn2_bias"].reshape(1, Dout), Doutp).astype(f32)
    lnbg = pad_last(params["lnb_gamma"].reshape(1, D), Dp).astype(compute_dtype)
    lnbb = pad_last(params["lnb_beta"].reshape(1, D), Dp).astype(compute_dtype)
    # Output gate folded into the post-LN affine; affine applied in out_dtype.
    lnpg = pad_last((params["gate"] * params["lnp_gamma"]).reshape(1, Dout),
                    Doutp).astype(out_dtype)
    lnpb = pad_last((params["gate"] * params["lnp_beta"]).reshape(1, Dout),
                    Doutp).astype(out_dtype)

    # Channel padding is a no-op when D % 128 == 0 (the realistic configs).
    xp = pad_last(x, Dp).astype(compute_dtype)

    # ---- L tiling: always a multiple of 8; no silent "one giant tile" path --
    l_tile = max(8, (int(l_tile) // 8) * 8)
    lt = min(l_tile, _round_up(L, 8))
    n_l = pl.cdiv(L, lt)   # trailing partial tile handled by Pallas OOB masking

    kernel = functools.partial(
        _adapter_kernel,
        d_true=D, d_pad=Dp, dout_true=Dout, dout_pad=Doutp,
        approx_recip=(compute_dtype != jnp.float32))

    out_p = pl.pallas_call(
        kernel,
        out_shape=jax.ShapeDtypeStruct((B, L, Doutp), out_dtype),
        grid=(B, n_l),
        in_specs=[
            pl.BlockSpec((1, lt, Dp), lambda b, l: (b, l, 0)),      # x tile
            pl.BlockSpec((1, T, Dp), lambda b, l: (b, 0, 0)),       # rep (precomputed)
            pl.BlockSpec((1, T, Dp), lambda b, l: (b, 0, 0)),       # gate_av * rep
            pl.BlockSpec((Dp, Cdp), lambda b, l: (0, 0)),           # W_down (BN1-folded)
            pl.BlockSpec((Cdp, Doutp), lambda b, l: (0, 0)),        # W_up (BN2-folded)
            pl.BlockSpec((1, Cdp), lambda b, l: (0, 0)),            # bn1 bias
            pl.BlockSpec((1, Doutp), lambda b, l: (0, 0)),          # bn2 bias
            pl.BlockSpec((1, Dp), lambda b, l: (0, 0)),             # ln_before gamma
            pl.BlockSpec((1, Dp), lambda b, l: (0, 0)),             # ln_before beta
            pl.BlockSpec((1, Doutp), lambda b, l: (0, 0)),          # ln_post gamma (gate folded)
            pl.BlockSpec((1, Doutp), lambda b, l: (0, 0)),          # ln_post beta  (gate folded)
        ],
        out_specs=pl.BlockSpec((1, lt, Doutp), lambda b, l: (b, l, 0)),
        compiler_params=pltpu.CompilerParams(
            dimension_semantics=("parallel", "parallel"),
            # lt=1024 at Dp=Doutp=768, Cdp=256 uses ~15-20 MiB including double
            # buffers and f32 intermediates -> safe under v7x's 64 MiB physical
            # VMEM and the 128 MiB of v5e/v6e.
            vmem_limit_bytes=48 * 1024 * 1024,
        ),
    )(xp, rep_p, repv_p, wd, wu, bn1b, bn2b, lnbg, lnbb, lnpg, lnpb)

    if slice_output and Doutp != Dout:
        return out_p[..., :Dout]
    return out_p


def _reference(x, vis, p, *, num_groups):
    """Plain-JAX f32 reference with the *original* module semantics
    (grouped convs, separate BN scale/bias, gate applied at the end)."""
    eps = 1e-5
    hp = lax.Precision.HIGHEST
    G = num_groups
    B, L, D = x.shape
    tok = jnp.broadcast_to(p["my_tokens"], (B,) + p["my_tokens"].shape)
    att = jax.nn.softmax(jnp.einsum("btd,bld->btl", tok, vis, precision=hp), -1)
    rep = tok + jnp.einsum("btl,bld->btd", att, vis, precision=hp)
    att2 = jax.nn.softmax(jnp.einsum("bld,btd->blt", x, rep, precision=hp), -1)
    x = x + p["gate_av"] * jnp.einsum("blt,btd->bld", att2, rep, precision=hp)
    mu = x.mean(-1, keepdims=True)
    va = ((x - mu) ** 2).mean(-1, keepdims=True)
    x = (x - mu) / jnp.sqrt(va + eps) * p["lnb_gamma"][0] + p["lnb_beta"][0]
    Dg = D // G
    z = jnp.concatenate(
        [jnp.einsum("bld,dc->blc", x[..., g * Dg:(g + 1) * Dg], p["w_down"][g],
                    precision=hp) for g in range(G)], -1)
    z = jnp.maximum(z * p["bn1_scale"][0] + p["bn1_bias"][0], 0.0)
    Cdg = z.shape[-1] // G
    y = jnp.concatenate(
        [jnp.einsum("blc,cd->bld", z[..., g * Cdg:(g + 1) * Cdg], p["w_up"][g],
                    precision=hp) for g in range(G)], -1)
    y = y * p["bn2_scale"][0] + p["bn2_bias"][0]
    mu = y.mean(-1, keepdims=True)
    va = ((y - mu) ** 2).mean(-1, keepdims=True)
    y = (y - mu) / jnp.sqrt(va + eps) * p["lnp_gamma"][0] + p["lnp_beta"][0]
    return p["gate"] * y


if __name__ == "__main__":
    # Small config consistent with the module: input_dim=32, output_dim=32,
    # reduction_factor=4 -> down_sample_size=8, num_tokens=8, num_conv_group=2.
    B, L, Lv = 2, 16, 8
    D, Dout, T, G = 32, 32, 8, 2
    Cd = D // 4

    key = jax.random.PRNGKey(0)
    ks = jax.random.split(key, 16)

    params = {
        "my_tokens": 0.1 * jax.random.normal(ks[0], (T, D), jnp.float32),
        "gate_av": 0.5 * jnp.ones((), jnp.float32),
        "gate": 0.7 * jnp.ones((), jnp.float32),
        # grouped 1x1 conv weights, stored transposed per group: (G, Cin/G, Cout/G)
        "w_down": 0.1 * jax.random.normal(ks[1], (G, D // G, Cd // G), jnp.float32),
        "w_up": 0.1 * jax.random.normal(ks[2], (G, Cd // G, Dout // G), jnp.float32),
        # BatchNorm folded (eval mode): scale = gamma/sqrt(var+eps), bias = beta - mean*scale
        "bn1_scale": 1.0 + 0.05 * jax.random.normal(ks[3], (1, Cd), jnp.float32),
        "bn1_bias": 0.05 * jax.random.normal(ks[4], (1, Cd), jnp.float32),
        "bn2_scale": 1.0 + 0.05 * jax.random.normal(ks[5], (1, Dout), jnp.float32),
        "bn2_bias": 0.05 * jax.random.normal(ks[6], (1, Dout), jnp.float32),
        "lnb_gamma": 1.0 + 0.05 * jax.random.normal(ks[7], (1, D), jnp.float32),
        "lnb_beta": 0.05 * jax.random.normal(ks[8], (1, D), jnp.float32),
        "lnp_gamma": 1.0 + 0.05 * jax.random.normal(ks[9], (1, Dout), jnp.float32),
        "lnp_beta": 0.05 * jax.random.normal(ks[10], (1, Dout), jnp.float32),
    }

    # Inputs (channels-last view of the PyTorch [B, C, L, 1] tensors).
    x = jax.random.normal(ks[11], (B, L, D), jnp.float32)
    vis = jax.random.normal(ks[12], (B, Lv, D), jnp.float32)

    ref = _reference(x, vis, params, num_groups=G)

    # Exact path (f32 operands, exact reciprocal, f32 output): tight check.
    out_f32 = visual_adapter(x, vis, params, num_groups=G, l_tile=8,
                             compute_dtype=jnp.float32)
    out_f32 = jax.block_until_ready(out_f32)
    assert out_f32.shape == (B, L, Dout)
    assert out_f32.dtype == jnp.float32
    assert jnp.allclose(out_f32, ref, atol=2e-4, rtol=2e-4), "f32 path mismatch"

    # Fast path (bf16 MXU operands, approximate-reciprocal softmax, bf16
    # output -> the attention rows do not sum *exactly* to 1 and the output
    # carries bf16 rounding); checked at bf16-level accuracy.
    out_bf16 = visual_adapter(x, vis, params, num_groups=G, l_tile=8,
                              compute_dtype=jnp.bfloat16)
    out_bf16 = jax.block_until_ready(out_bf16)
    assert out_bf16.shape == (B, L, Dout)
    assert out_bf16.dtype == jnp.bfloat16
    out_bf16_f32 = out_bf16.astype(jnp.float32)
    assert jnp.all(jnp.isfinite(out_bf16_f32))
    assert jnp.allclose(out_bf16_f32, ref, atol=5e-2, rtol=5e-2), "bf16 path mismatch"

    print("KERNEL_OK")
</pallas_src>

<mosaic_0001>
module attributes {stable_mosaic.version = 11 : i64} {
  func.func @_adapter_kernel(%arg0: i32, %arg1: i32, %arg2: memref<1x8x128xf32, #tpu.memory_space<vmem>>, %arg3: memref<1x8x128xf32, #tpu.memory_space<vmem>>, %arg4: memref<1x8x128xf32, #tpu.memory_space<vmem>>, %arg5: memref<128x128xf32, #tpu.memory_space<vmem>>, %arg6: memref<128x128xf32, #tpu.memory_space<vmem>>, %arg7: memref<1x128xf32, #tpu.memory_space<vmem>>, %arg8: memref<1x128xf32, #tpu.memory_space<vmem>>, %arg9: memref<1x128xf32, #tpu.memory_space<vmem>>, %arg10: memref<1x128xf32, #tpu.memory_space<vmem>>, %arg11: memref<1x128xf32, #tpu.memory_space<vmem>>, %arg12: memref<1x128xf32, #tpu.memory_space<vmem>>, %arg13: memref<1x8x128xf32, #tpu.memory_space<vmem>>) attributes {dimension_semantics = [#tpu.dimension_semantics<parallel>, #tpu.dimension_semantics<parallel>], iteration_bounds = array<i64: 2, 2>, scalar_prefetch = 0 : i64, scratch_operands = 0 : i64, tpu.core_type = #tpu.core_type<tc>, window_params = [{transform_indices = @transform_0, window_bounds = array<i64: 1, 8, 128>}, {transform_indices = @transform_1, window_bounds = array<i64: 1, 8, 128>}, {transform_indices = @transform_2, window_bounds = array<i64: 1, 8, 128>}, {pipeline_mode = #tpu.pipeline_mode<synchronous>, transform_indices = @transform_3, window_bounds = array<i64: 128, 128>}, {pipeline_mode = #tpu.pipeline_mode<synchronous>, transform_indices = @transform_4, window_bounds = array<i64: 128, 128>}, {pipeline_mode = #tpu.pipeline_mode<synchronous>, transform_indices = @transform_5, window_bounds = array<i64: 1, 128>}, {pipeline_mode = #tpu.pipeline_mode<synchronous>, transform_indices = @transform_6, window_bounds = array<i64: 1, 128>}, {pipeline_mode = #tpu.pipeline_mode<synchronous>, transform_indices = @transform_7, window_bounds = array<i64: 1, 128>}, {pipeline_mode = #tpu.pipeline_mode<synchronous>, transform_indices = @transform_8, window_bounds = array<i64: 1, 128>}, {pipeline_mode = #tpu.pipeline_mode<synchronous>, transform_indices = @transform_9, window_bounds = array<i64: 1, 128>}, {pipeline_mode = #tpu.pipeline_mode<synchronous>, transform_indices = @transform_10, window_bounds = array<i64: 1, 128>}, {transform_indices = @transform_11, window_bounds = array<i64: 1, 8, 128>}]} {
    %c0 = arith.constant 0 : index
    %c0_0 = arith.constant 0 : index
    %c0_1 = arith.constant 0 : index
    %0 = vector.load %arg2[%c0, %c0_0, %c0_1] : memref<1x8x128xf32, #tpu.memory_space<vmem>>, vector<1x8x128xf32>
    %1 = vector.shape_cast %0 : vector<1x8x128xf32> to vector<8x128xf32>
    %c0_2 = arith.constant 0 : index
    %c0_3 = arith.constant 0 : index
    %c0_4 = arith.constant 0 : index
    %2 = vector.load %arg3[%c0_2, %c0_3, %c0_4] : memref<1x8x128xf32, #tpu.memory_space<vmem>>, vector<1x8x128xf32>
    %3 = vector.shape_cast %2 : vector<1x8x128xf32> to vector<8x128xf32>
    %c0_5 = arith.constant 0 : index
    %c0_6 = arith.constant 0 : index
    %c0_7 = arith.constant 0 : index
    %4 = vector.load %arg4[%c0_5, %c0_6, %c0_7] : memref<1x8x128xf32, #tpu.memory_space<vmem>>, vector<1x8x128xf32>
    %5 = vector.shape_cast %4 : vector<1x8x128xf32> to vector<8x128xf32>
    %cst = arith.constant dense<0.000000e+00> : vector<8x8xf32>
    %6 = tpu.matmul %1, %3, %cst {dimension_numbers = #tpu.dot_dimension_numbers<[1], [1], [0], [0], [0, 0, 1, 0], [], []>} : vector<8x128xf32>, vector<8x128xf32>, vector<8x8xf32> -> vector<8x8xf32>
    %cst_8 = arith.constant dense<0xFF800000> : vector<8xf32>
    %7 = vector.multi_reduction <maximumf>, %6, %cst_8 [1] : vector<8x8xf32> to vector<8xf32>
    %8 = vector.shape_cast %7 : vector<8xf32> to vector<8x1xf32>
    %9 = vector.broadcast %8 : vector<8x1xf32> to vector<8x8xf32>
    %10 = arith.subf %6, %9 : vector<8x8xf32>
    %11 = math.exp %10 : vector<8x8xf32>
    %cst_9 = arith.constant dense<0.000000e+00> : vector<8xf32>
    %12 = vector.multi_reduction <add>, %11, %cst_9 [1] : vector<8x8xf32> to vector<8xf32>
    %13 = vector.shape_cast %12 : vector<8xf32> to vector<8x1xf32>
    %14 = tpu.reciprocal %13 : vector<8x1xf32> -> vector<8x1xf32>
    %15 = vector.broadcast %14 : vector<8x1xf32> to vector<8x8xf32>
    %16 = arith.mulf %11, %15 : vector<8x8xf32>
    %cst_10 = arith.constant dense<0.000000e+00> : vector<8x128xf32>
    %17 = tpu.matmul %16, %5, %cst_10 {dimension_numbers = #tpu.dot_dimension_numbers<[1], [0], [0], [1], [0, 0, 1, 1], [], []>} : vector<8x8xf32>, vector<8x128xf32>, vector<8x128xf32> -> vector<8x128xf32>
    %18 = arith.addf %1, %17 : vector<8x128xf32>
    %c0_11 = arith.constant 0 : index
    %c0_12 = arith.constant 0 : index
    %19 = vector.load %arg9[%c0_11, %c0_12] : memref<1x128xf32, #tpu.memory_space<vmem>>, vector<1x128xf32>
    %c0_13 = arith.constant 0 : index
    %c0_14 = arith.constant 0 : index
    %20 = vector.load %arg10[%c0_13, %c0_14] : memref<1x128xf32, #tpu.memory_space<vmem>>, vector<1x128xf32>
    %cst_15 = arith.constant dense<0.000000e+00> : vector<8xf32>
    %21 = vector.multi_reduction <add>, %18, %cst_15 [1] : vector<8x128xf32> to vector<8xf32>
    %22 = vector.shape_cast %21 : vector<8xf32> to vector<8x1xf32>
    %cst_16 = arith.constant 3.125000e-02 : f32
    %23 = vector.broadcast %cst_16 : f32 to vector<8x1xf32>
    %24 = arith.mulf %22, %23 : vector<8x1xf32>
    %25 = vector.broadcast %24 : vector<8x1xf32> to vector<8x128xf32>
    %26 = arith.subf %18, %25 : vector<8x128xf32>
    %27 = arith.mulf %26, %26 : vector<8x128xf32>
    %cst_17 = arith.constant dense<0.000000e+00> : vector<8xf32>
    %28 = vector.multi_reduction <add>, %27, %cst_17 [1] : vector<8x128xf32> to vector<8xf32>
    %29 = vector.shape_cast %28 : vector<8xf32> to vector<8x1xf32>
    %30 = arith.mulf %24, %24 : vector<8x1xf32>
    %cst_18 = arith.constant 9.600000e+01 : f32
    %31 = vector.broadcast %cst_18 : f32 to vector<8x1xf32>
    %32 = arith.mulf %31, %30 : vector<8x1xf32>
    %33 = arith.subf %29, %32 : vector<8x1xf32>
    %cst_19 = arith.constant 3.125000e-02 : f32
    %34 = vector.broadcast %cst_19 : f32 to vector<8x1xf32>
    %35 = arith.mulf %33, %34 : vector<8x1xf32>
    %cst_20 = arith.constant 9.99999974E-6 : f32
    %36 = vector.broadcast %cst_20 : f32 to vector<8x1xf32>
    %37 = arith.addf %35, %36 : vector<8x1xf32>
    %38 = math.rsqrt %37 : vector<8x1xf32>
    %39 = vector.broadcast %38 : vector<8x1xf32> to vector<8x128xf32>
    %40 = arith.mulf %26, %39 : vector<8x128xf32>
    %41 = vector.broadcast %19 : vector<1x128xf32> to vector<8x128xf32>
    %42 = arith.mulf %40, %41 : vector<8x128xf32>
    %43 = vector.broadcast %20 : vector<1x128xf32> to vector<8x128xf32>
    %44 = arith.addf %42, %43 : vector<8x128xf32>
    %c0_21 = arith.constant 0 : index
    %c0_22 = arith.constant 0 : index
    %45 = vector.load %arg5[%c0_21, %c0_22] : memref<128x128xf32, #tpu.memory_space<vmem>>, vector<128x128xf32>
    %cst_23 = arith.constant dense<0.000000e+00> : vector<8x128xf32>
    %46 = tpu.matmul %44, %45, %cst_23 {dimension_numbers = #tpu.dot_dimension_numbers<[1], [0], [0], [1], [0, 0, 1, 1], [], []>} : vector<8x128xf32>, vector<128x128xf32>, vector<8x128xf32> -> vector<8x128xf32>
    %c0_24 = arith.constant 0 : index
    %c0_25 = arith.constant 0 : index
    %47 = vector.load %arg7[%c0_24, %c0_25] : memref<1x128xf32, #tpu.memory_space<vmem>>, vector<1x128xf32>
    %48 = vector.broadcast %47 : vector<1x128xf32> to vector<8x128xf32>
    %49 = arith.addf %46, %48 : vector<8x128xf32>
    %cst_26 = arith.constant 0.000000e+00 : f32
    %50 = vector.broadcast %cst_26 : f32 to vector<8x128xf32>
    %51 = arith.maximumf %49, %50 : vector<8x128xf32>
    %c0_27 = arith.constant 0 : index
    %c0_28 = arith.constant 0 : index
    %52 = vector.load %arg6[%c0_27, %c0_28] : memref<128x128xf32, #tpu.memory_space<vmem>>, vector<128x128xf32>
    %cst_29 = arith.constant dense<0.000000e+00> : vector<8x128xf32>
    %53 = tpu.matmul %51, %52, %cst_29 {dimension_numbers = #tpu.dot_dimension_numbers<[1], [0], [0], [1], [0, 0, 1, 1], [], []>} : vector<8x128xf32>, vector<128x128xf32>, vector<8x128xf32> -> vector<8x128xf32>
    %c0_30 = arith.constant 0 : index
    %c0_31 = arith.constant 0 : index
    %54 = vector.load %arg8[%c0_30, %c0_31] : memref<1x128xf32, #tpu.memory_space<vmem>>, vector<1x128xf32>
    %55 = vector.broadcast %54 : vector<1x128xf32> to vector<8x128xf32>
    %56 = arith.addf %53, %55 : vector<8x128xf32>
    %c0_32 = arith.constant 0 : index
    %c0_33 = arith.constant 0 : index
    %57 = vector.load %arg11[%c0_32, %c0_33] : memref<1x128xf32, #tpu.memory_space<vmem>>, vector<1x128xf32>
    %c0_34 = arith.constant 0 : index
    %c0_35 = arith.constant 0 : index
    %58 = vector.load %arg12[%c0_34, %c0_35] : memref<1x128xf32, #tpu.memory_space<vmem>>, vector<1x128xf32>
    %cst_36 = arith.constant dense<0.000000e+00> : vector<8xf32>
    %59 = vector.multi_reduction <add>, %56, %cst_36 [1] : vector<8x128xf32> to vector<8xf32>
    %60 = vector.shape_cast %59 : vector<8xf32> to vector<8x1xf32>
    %cst_37 = arith.constant 3.125000e-02 : f32
    %61 = vector.broadcast %cst_37 : f32 to vector<8x1xf32>
    %62 = arith.mulf %60, %61 : vector<8x1xf32>
    %63 = vector.broadcast %62 : vector<8x1xf32> to vector<8x128xf32>
    %64 = arith.subf %56, %63 : vector<8x128xf32>
    %65 = arith.mulf %64, %64 : vector<8x128xf32>
    %cst_38 = arith.constant dense<0.000000e+00> : vector<8xf32>
    %66 = vector.multi_reduction <add>, %65, %cst_38 [1] : vector<8x128xf32> to vector<8xf32>
    %67 = vector.shape_cast %66 : vector<8xf32> to vector<8x1xf32>
    %68 = arith.mulf %62, %62 : vector<8x1xf32>
    %cst_39 = arith.constant 9.600000e+01 : f32
    %69 = vector.broadcast %cst_39 : f32 to vector<8x1xf32>
    %70 = arith.mulf %69, %68 : vector<8x1xf32>
    %71 = arith.subf %67, %70 : vector<8x1xf32>
    %cst_40 = arith.constant 3.125000e-02 : f32
    %72 = vector.broadcast %cst_40 : f32 to vector<8x1xf32>
    %73 = arith.mulf %71, %72 : vector<8x1xf32>
    %cst_41 = arith.constant 9.99999974E-6 : f32
    %74 = vector.broadcast %cst_41 : f32 to vector<8x1xf32>
    %75 = arith.addf %73, %74 : vector<8x1xf32>
    %76 = math.rsqrt %75 : vector<8x1xf32>
    %77 = vector.broadcast %76 : vector<8x1xf32> to vector<8x128xf32>
    %78 = arith.mulf %64, %77 : vector<8x128xf32>
    %79 = vector.broadcast %57 : vector<1x128xf32> to vector<8x128xf32>
    %80 = arith.mulf %78, %79 : vector<8x128xf32>
    %81 = vector.broadcast %58 : vector<1x128xf32> to vector<8x128xf32>
    %82 = arith.addf %80, %81 : vector<8x128xf32>
    %c0_42 = arith.constant 0 : index
    %c0_43 = arith.constant 0 : index
    %c0_44 = arith.constant 0 : index
    %83 = vector.load %arg13[%c0_42, %c0_43, %c0_44] : memref<1x8x128xf32, #tpu.memory_space<vmem>>, vector<1x8x128xf32>
    %84 = vector.shape_cast %83 : vector<1x8x128xf32> to vector<8x128xf32>
    %85 = vector.shape_cast %82 : vector<8x128xf32> to vector<1x8x128xf32>
    tpu.vector_store %arg13[%c0_42, %c0_43, %c0_44], %85 {strides = array<i32>} : memref<1x8x128xf32, #tpu.memory_space<vmem>>, vector<1x8x128xf32>,
    return
  }
  func.func @transform_0(%arg0: i32, %arg1: i32) -> (i32, i32, i32) {
    %c0_i32 = arith.constant 0 : i32
    %c0_i32_0 = arith.constant 0 : i32
    return %arg0, %arg1, %c0_i32 : i32, i32, i32
  }
  func.func @transform_1(%arg0: i32, %arg1: i32) -> (i32, i32, i32) {
    %c0_i32 = arith.constant 0 : i32
    %c0_i32_0 = arith.constant 0 : i32
    %c0_i32_1 = arith.constant 0 : i32
    return %arg0, %c0_i32, %c0_i32_0 : i32, i32, i32
  }
  func.func @transform_2(%arg0: i32, %arg1: i32) -> (i32, i32, i32) {
    %c0_i32 = arith.constant 0 : i32
    %c0_i32_0 = arith.constant 0 : i32
    %c0_i32_1 = arith.constant 0 : i32
    return %arg0, %c0_i32, %c0_i32_0 : i32, i32, i32
  }
  func.func @transform_3(%arg0: i32, %arg1: i32) -> (i32, i32) {
    %c0_i32 = arith.constant 0 : i32
    %c0_i32_0 = arith.constant 0 : i32
    %c0_i32_1 = arith.constant 0 : i32
    return %c0_i32, %c0_i32_0 : i32, i32
  }
  func.func @transform_4(%arg0: i32, %arg1: i32) -> (i32, i32) {
    %c0_i32 = arith.constant 0 : i32
    %c0_i32_0 = arith.constant 0 : i32
    %c0_i32_1 = arith.constant 0 : i32
    return %c0_i32, %c0_i32_0 : i32, i32
  }
  func.func @transform_5(%arg0: i32, %arg1: i32) -> (i32, i32) {
    %c0_i32 = arith.constant 0 : i32
    %c0_i32_0 = arith.constant 0 : i32
    %c0_i32_1 = arith.constant 0 : i32
    return %c0_i32, %c0_i32_0 : i32, i32
  }
  func.func @transform_6(%arg0: i32, %arg1: i32) -> (i32, i32) {
    %c0_i32 = arith.constant 0 : i32
    %c0_i32_0 = arith.constant 0 : i32
    %c0_i32_1 = arith.constant 0 : i32
    return %c0_i32, %c0_i32_0 : i32, i32
  }
  func.func @transform_7(%arg0: i32, %arg1: i32) -> (i32, i32) {
    %c0_i32 = arith.constant 0 : i32
    %c0_i32_0 = arith.constant 0 : i32
    %c0_i32_1 = arith.constant 0 : i32
    return %c0_i32, %c0_i32_0 : i32, i32
  }
  func.func @transform_8(%arg0: i32, %arg1: i32) -> (i32, i32) {
    %c0_i32 = arith.constant 0 : i32
    %c0_i32_0 = arith.constant 0 : i32
    %c0_i32_1 = arith.constant 0 : i32
    return %c0_i32, %c0_i32_0 : i32, i32
  }
  func.func @transform_9(%arg0: i32, %arg1: i32) -> (i32, i32) {
    %c0_i32 = arith.constant 0 : i32
    %c0_i32_0 = arith.constant 0 : i32
    %c0_i32_1 = arith.constant 0 : i32
    return %c0_i32, %c0_i32_0 : i32, i32
  }
  func.func @transform_10(%arg0: i32, %arg1: i32) -> (i32, i32) {
    %c0_i32 = arith.constant 0 : i32
    %c0_i32_0 = arith.constant 0 : i32
    %c0_i32_1 = arith.constant 0 : i32
    return %c0_i32, %c0_i32_0 : i32, i32
  }
  func.func @transform_11(%arg0: i32, %arg1: i32) -> (i32, i32, i32) {
    %c0_i32 = arith.constant 0 : i32
    %c0_i32_0 = arith.constant 0 : i32
    return %arg0, %arg1, %c0_i32 : i32, i32, i32
  }
}

</mosaic_0001>

<llo_original>
// kernel: tpu_custom_call.1
$region0: #{tpu_custom_call.1}
  #allocation0 [shape = 'u32[]', space=smem, size = 0x4, offset = 0x4, fixed_abs, tag = 'smem constant byte address 0x4 - core index']
  #allocation1 [shape = 'u32[144,128]{1,0:T(1,128)}', space=vmem, size = 0x12000, scoped, tag = 'internal scratch']
  %s0 = inlined_call_operand.hbm [shape: f32[2,16,128], index: 0, kind: input, shape index: {}]
  %s1 = inlined_call_operand.hbm [shape: f32[2,8,128], index: 1, kind: input, shape index: {}]
  %s2 = inlined_call_operand.hbm [shape: f32[2,8,128], index: 2, kind: input, shape index: {}]
  %s3 = inlined_call_operand.hbm [shape: f32[128,128], index: 3, kind: input, shape index: {}]
  %s4 = inlined_call_operand.hbm [shape: f32[128,128], index: 4, kind: input, shape index: {}]
  %s5 = inlined_call_operand.vmem [shape: f32[1,128], index: 5, kind: input, shape index: {}]
  %s6 = inlined_call_operand.vmem [shape: f32[1,128], index: 6, kind: input, shape index: {}]
  %s7 = inlined_call_operand.vmem [shape: f32[1,128], index: 7, kind: input, shape index: {}]
  %s8 = inlined_call_operand.vmem [shape: f32[1,128], index: 8, kind: input, shape index: {}]
  %s9 = inlined_call_operand.vmem [shape: f32[1,128], index: 9, kind: input, shape index: {}]
  %s10 = inlined_call_operand.vmem [shape: f32[1,128], index: 10, kind: input, shape index: {}]
  %s11 = inlined_call_operand.hbm [shape: f32[2,16,128], index: 11, kind: output, shape index: {}]
  %s12 = sld [smem:[#allocation0]]
  $region97: #{tpu_custom_call.1} parent=0
    _
  %s14 = ssub.s32 1, %s12
  %s15 = scalar_select 0, %s14, %s12
  $region1: #{tpu_custom_call.1} parent=0
    #allocation2 [shape = 'u8[8192]{0}', space=vmem, size = 0x2000, scoped, tag = 'input window, operand 0']
    #allocation3 [shape = 's32[2]{0}', space=sflag, size = 0x8, scoped, tag = 'scoped memory for tpu_custom_call.1']
    #allocation4 [shape = 's32[2]{0}', space=sflag, size = 0x8, scoped, tag = 'scoped memory for tpu_custom_call.1']
    #allocation5 [shape = 'u8[8192]{0}', space=vmem, size = 0x2000, scoped, tag = 'input window, operand 1']
    #allocation6 [shape = 's32[2]{0}', space=sflag, size = 0x8, scoped, tag = 'scoped memory for tpu_custom_call.1']
    #allocation7 [shape = 'u8[8192]{0}', space=vmem, size = 0x2000, scoped, tag = 'input window, operand 2']
    #allocation8 [shape = 'u8[65536]{0}', space=vmem, size = 0x10000, scoped, tag = 'input window, operand 3, single buffered']
    #allocation9 [shape = 's32[1]{0}', space=sflag, size = 0x4, scoped, tag = 'scoped memory for tpu_custom_call.1']
    #allocation10 [shape = 'u8[65536]{0}', space=vmem, size = 0x10000, scoped, tag = 'input window, operand 4, single buffered']
    #allocation11 [shape = 'u8[8192]{0}', space=vmem, size = 0x2000, scoped, tag = 'output window, operand 0']
    %16 = vsyncpa [#allocation3], 0
    %s17 = scalar_lea.sflag [#allocation3], 1
    %18 = vsyncpa %s17, 0
    %19 = vsyncpa [#allocation6], 0
    %s20 = scalar_lea.sflag [#allocation6], 1
    %21 = vsyncpa %s20, 0
    %22 = vsyncpa [#allocation9], 0
    %23 = vsyncpa [#allocation4], 0
    %s24 = scalar_lea.sflag [#allocation4], 1
    %25 = vsyncpa %s24, 0
    loop: start=0, step=1, limit=6
    $region2: #{tpu_custom_call.1} parent=1 // loop_pre_header
      _
    $region3: #{tpu_custom_call.1} parent=1 // loop_header
      %s27 = sphi 0, %s31
      %p28 = scmp.ge.s32.totalorder %s27, 6
      %s34 = sphi 0, %s46
      %s35 = sphi 0, %s42
      %s36 = sphi 0, %s34
      %s37 = sphi 0, %s35
      %s38 = sphi 0, %s36
      %s39 = sphi 0, %s37
      %s51 = sphi 0, %s53
      %s54 = sphi 0, %s51
      %s55 = sphi 0, %s54
      %s71 = sphi 0, %s55
      %s77 = sphi 0, %s79
      %s80 = sphi 0, %s77
      %s81 = sphi 0, %s80
      %s97 = sphi 0, %s81
      %s103 = sphi 0, %s105
      %s106 = sphi 0, %s103
      %s107 = sphi 0, %s106
      %s123 = sphi 0, %s107
      %s127 = sphi 0, %s127
      %s129 = sphi 0, %s127
      %s130 = sphi 0, %s129
      %s144 = sphi 0, %s130
      %s148 = sphi 0, %s148
      %s150 = sphi 0, %s148
      %s151 = sphi 0, %s150
      %s165 = sphi 0, %s151
      %s169 = sphi 0, %s169
      %s171 = sphi 0, %s169
      %s172 = sphi 0, %s171
      %s186 = sphi 0, %s172
      %s190 = sphi 0, %s190
      %s192 = sphi 0, %s190
      %s193 = sphi 0, %s192
      %s207 = sphi 0, %s193
      %s211 = sphi 0, %s211
      %s213 = sphi 0, %s211
      %s214 = sphi 0, %s213
      %s228 = sphi 0, %s214
      %s232 = sphi 0, %s232
      %s234 = sphi 0, %s232
      %s235 = sphi 0, %s234
      %s249 = sphi 0, %s235
      %s253 = sphi 0, %s253
      %s255 = sphi 0, %s253
      %s256 = sphi 0, %s255
      %s270 = sphi 0, %s256
      %s274 = sphi 0, %s274
      %s276 = sphi 0, %s274
      %s277 = sphi 0, %s276
      %s291 = sphi 0, %s277
      %s299 = sphi 0, %s301
      %s302 = sphi 0, %s299
      %s303 = sphi 0, %s302
      %s319 = sphi 0, %s303
    $region4: #{tpu_custom_call.1} parent=1 // loop_header_branch
      %30 = sbr.rel (%p28) target = $region8
    $region5: #{tpu_custom_call.1} parent=1 // loop_body
      %s32 = ssub.s32 %s27, 1
      %s33 = ssub.s32 %s27, 2
      %s40 = sadd.s32 1, %s35
      %p41 = scmp.ge.s32.totalorder %s40, 2
      %s42 = scalar_select %p41, 0, %s40
      %s43 = sadd.s32 1, %s34
      %s44 = scalar_select %p41, %s43, %s34
      %p45 = scmp.ge.s32.totalorder %s44, 2
      %s46 = scalar_select %p45, 0, %s44
      %s47 = ssub.s32 %s34, %s46
      %s48 = ssub.s32 %s35, %s42
      %s49 = sor.u32 %s47, %s48
      %p50 = scmp.eq.s32.totalorder %s49, 0
      %s52 = sadd.s32 %s51, 1
      %s53 = scalar_select %p50, %s51, %s52
      %p56 = pneg %p50
      %p57 = scmp.eq.s32.totalorder %s27, 3
      %p58 = por %p56, %p57
      %p59 = scmp.ne.s32.totalorder %s51, %s54
      %p60 = scmp.eq.s32.totalorder %s27, 0
      %p61 = por %p59, %p60
      %p62 = scmp.ne.s32.totalorder %s51, %s54
      %p63 = scmp.eq.s32.totalorder %s32, 3
      %p64 = por %p62, %p63
      %p65 = scmp.ne.s32.totalorder %s54, %s55
      %p66 = scmp.eq.s32.totalorder %s32, 0
      %p67 = por %p65, %p66
      %p68 = scmp.ne.s32.totalorder %s54, %s55
      %p69 = scmp.eq.s32.totalorder %s33, 3
      %p70 = por %p68, %p69
      %p72 = scmp.ne.s32.totalorder %s55, %s71
      %p73 = scmp.eq.s32.totalorder %s33, 0
      %p74 = por %p72, %p73
      %s75 = ssub.s32 %s34, %s46
      %p76 = scmp.eq.s32.totalorder %s75, 0
      %s78 = sadd.s32 %s77, 1
      %s79 = scalar_select %p76, %s77, %s78
      %p82 = pneg %p76
      %p83 = scmp.eq.s32.totalorder %s27, 3
      %p84 = por %p82, %p83
      %p85 = scmp.ne.s32.totalorder %s77, %s80
      %p86 = scmp.eq.s32.totalorder %s27, 0
      %p87 = por %p85, %p86
      %p88 = scmp.ne.s32.totalorder %s77, %s80
      %p89 = scmp.eq.s32.totalorder %s32, 3
      %p90 = por %p88, %p89
      %p91 = scmp.ne.s32.totalorder %s80, %s81
      %p92 = scmp.eq.s32.totalorder %s32, 0
      %p93 = por %p91, %p92
      %p94 = scmp.ne.s32.totalorder %s80, %s81
      %p95 = scmp.eq.s32.totalorder %s33, 3
      %p96 = por %p94, %p95
      %p98 = scmp.ne.s32.totalorder %s81, %s97
      %p99 = scmp.eq.s32.totalorder %s33, 0
      %p100 = por %p98, %p99
      %s101 = ssub.s32 %s34, %s46
      %p102 = scmp.eq.s32.totalorder %s101, 0
      %s104 = sadd.s32 %s103, 1
      %s105 = scalar_select %p102, %s103, %s104
      %p108 = pneg %p102
      %p109 = scmp.eq.s32.totalorder %s27, 3
      %p110 = por %p108, %p109
      %p111 = scmp.ne.s32.totalorder %s103, %s106
      %p112 = scmp.eq.s32.totalorder %s27, 0
      %p113 = por %p111, %p112
      %p114 = scmp.ne.s32.totalorder %s103, %s106
      %p115 = scmp.eq.s32.totalorder %s32, 3
      %p116 = por %p114, %p115
      %p117 = scmp.ne.s32.totalorder %s106, %s107
      %p118 = scmp.eq.s32.totalorder %s32, 0
      %p119 = por %p117, %p118
      %p120 = scmp.ne.s32.totalorder %s106, %s107
      %p121 = scmp.eq.s32.totalorder %s33, 3
      %p122 = por %p120, %p121
      %p124 = scmp.ne.s32.totalorder %s107, %s123
      %p125 = scmp.eq.s32.totalorder %s33, 0
      %p126 = por %p124, %p125
      %s128 = sadd.s32 %s127, 1
      %p131 = scmp.eq.s32.totalorder %s27, 3
      %p132 = scmp.ne.s32.totalorder %s127, %s129
      %p133 = scmp.eq.s32.totalorder %s27, 0
      %p134 = por %p132, %p133
      %p135 = scmp.ne.s32.totalorder %s127, %s129
      %p136 = scmp.eq.s32.totalorder %s32, 3
      %p137 = por %p135, %p136
      %p138 = scmp.ne.s32.totalorder %s129, %s130
      %p139 = scmp.eq.s32.totalorder %s32, 0
      %p140 = por %p138, %p139
      %p141 = scmp.ne.s32.totalorder %s129, %s130
      %p142 = scmp.eq.s32.totalorder %s33, 3
      %p143 = por %p141, %p142
      %p145 = scmp.ne.s32.totalorder %s130, %s144
      %p146 = scmp.eq.s32.totalorder %s33, 0
      %p147 = por %p145, %p146
      %s149 = sadd.s32 %s148, 1
      %p152 = scmp.eq.s32.totalorder %s27, 3
      %p153 = scmp.ne.s32.totalorder %s148, %s150
      %p154 = scmp.eq.s32.totalorder %s27, 0
      %p155 = por %p153, %p154
      %p156 = scmp.ne.s32.totalorder %s148, %s150
      %p157 = scmp.eq.s32.totalorder %s32, 3
      %p158 = por %p156, %p157
      %p159 = scmp.ne.s32.totalorder %s150, %s151
      %p160 = scmp.eq.s32.totalorder %s32, 0
      %p161 = por %p159, %p160
      %p162 = scmp.ne.s32.totalorder %s150, %s151
      %p163 = scmp.eq.s32.totalorder %s33, 3
      %p164 = por %p162, %p163
      %p166 = scmp.ne.s32.totalorder %s151, %s165
      %p167 = scmp.eq.s32.totalorder %s33, 0
      %p168 = por %p166, %p167
      %s170 = sadd.s32 %s169, 1
      %p173 = scmp.eq.s32.totalorder %s27, 3
      %p174 = scmp.ne.s32.totalorder %s169, %s171
      %p175 = scmp.eq.s32.totalorder %s27, 0
      %p176 = por %p174, %p175
      %p177 = scmp.ne.s32.totalorder %s169, %s171
      %p178 = scmp.eq.s32.totalorder %s32, 3
      %p179 = por %p177, %p178
      %p180 = scmp.ne.s32.totalorder %s171, %s172
      %p181 = scmp.eq.s32.totalorder %s32, 0
      %p182 = por %p180, %p181
      %p183 = scmp.ne.s32.totalorder %s171, %s172
      %p184 = scmp.eq.s32.totalorder %s33, 3
      %p185 = por %p183, %p184
      %p187 = scmp.ne.s32.totalorder %s172, %s186
      %p188 = scmp.eq.s32.totalorder %s33, 0
      %p189 = por %p187, %p188
      %s191 = sadd.s32 %s190, 1
      %p194 = scmp.eq.s32.totalorder %s27, 3
      %p195 = scmp.ne.s32.totalorder %s190, %s192
      %p196 = scmp.eq.s32.totalorder %s27, 0
      %p197 = por %p195, %p196
      %p198 = scmp.ne.s32.totalorder %s190, %s192
      %p199 = scmp.eq.s32.totalorder %s32, 3
      %p200 = por %p198, %p199
      %p201 = scmp.ne.s32.totalorder %s192, %s193
      %p202 = scmp.eq.s32.totalorder %s32, 0
      %p203 = por %p201, %p202
      %p204 = scmp.ne.s32.totalorder %s192, %s193
      %p205 = scmp.eq.s32.totalorder %s33, 3
      %p206 = por %p204, %p205
      %p208 = scmp.ne.s32.totalorder %s193, %s207
      %p209 = scmp.eq.s32.totalorder %s33, 0
      %p210 = por %p208, %p209
      %s212 = sadd.s32 %s211, 1
      %p215 = scmp.eq.s32.totalorder %s27, 3
      %p216 = scmp.ne.s32.totalorder %s211, %s213
      %p217 = scmp.eq.s32.totalorder %s27, 0
      %p218 = por %p216, %p217
      %p219 = scmp.ne.s32.totalorder %s211, %s213
      %p220 = scmp.eq.s32.totalorder %s32, 3
      %p221 = por %p219, %p220
      %p222 = scmp.ne.s32.totalorder %s213, %s214
      %p223 = scmp.eq.s32.totalorder %s32, 0
      %p224 = por %p222, %p223
      %p225 = scmp.ne.s32.totalorder %s213, %s214
      %p226 = scmp.eq.s32.totalorder %s33, 3
      %p227 = por %p225, %p226
      %p229 = scmp.ne.s32.totalorder %s214, %s228
      %p230 = scmp.eq.s32.totalorder %s33, 0
      %p231 = por %p229, %p230
      %s233 = sadd.s32 %s232, 1
      %p236 = scmp.eq.s32.totalorder %s27, 3
      %p237 = scmp.ne.s32.totalorder %s232, %s234
      %p238 = scmp.eq.s32.totalorder %s27, 0
      %p239 = por %p237, %p238
      %p240 = scmp.ne.s32.totalorder %s232, %s234
      %p241 = scmp.eq.s32.totalorder %s32, 3
      %p242 = por %p240, %p241
      %p243 = scmp.ne.s32.totalorder %s234, %s235
      %p244 = scmp.eq.s32.totalorder %s32, 0
      %p245 = por %p243, %p244
      %p246 = scmp.ne.s32.totalorder %s234, %s235
      %p247 = scmp.eq.s32.totalorder %s33, 3
      %p248 = por %p246, %p247
      %p250 = scmp.ne.s32.totalorder %s235, %s249
      %p251 = scmp.eq.s32.totalorder %s33, 0
      %p252 = por %p250, %p251
      %s254 = sadd.s32 %s253, 1
      %p257 = scmp.eq.s32.totalorder %s27, 3
      %p258 = scmp.ne.s32.totalorder %s253, %s255
      %p259 = scmp.eq.s32.totalorder %s27, 0
      %p260 = por %p258, %p259
      %p261 = scmp.ne.s32.totalorder %s253, %s255
      %p262 = scmp.eq.s32.totalorder %s32, 3
      %p263 = por %p261, %p262
      %p264 = scmp.ne.s32.totalorder %s255, %s256
      %p265 = scmp.eq.s32.totalorder %s32, 0
      %p266 = por %p264, %p265
      %p267 = scmp.ne.s32.totalorder %s255, %s256
      %p268 = scmp.eq.s32.totalorder %s33, 3
      %p269 = por %p267, %p268
      %p271 = scmp.ne.s32.totalorder %s256, %s270
      %p272 = scmp.eq.s32.totalorder %s33, 0
      %p273 = por %p271, %p272
      %s275 = sadd.s32 %s274, 1
      %p278 = scmp.eq.s32.totalorder %s27, 3
      %p279 = scmp.ne.s32.totalorder %s274, %s276
      %p280 = scmp.eq.s32.totalorder %s27, 0
      %p281 = por %p279, %p280
      %p282 = scmp.ne.s32.totalorder %s274, %s276
      %p283 = scmp.eq.s32.totalorder %s32, 3
      %p284 = por %p282, %p283
      %p285 = scmp.ne.s32.totalorder %s276, %s277
      %p286 = scmp.eq.s32.totalorder %s32, 0
      %p287 = por %p285, %p286
      %p288 = scmp.ne.s32.totalorder %s276, %s277
      %p289 = scmp.eq.s32.totalorder %s33, 3
      %p290 = por %p288, %p289
      %p292 = scmp.ne.s32.totalorder %s277, %s291
      %p293 = scmp.eq.s32.totalorder %s33, 0
      %p294 = por %p292, %p293
      %s295 = ssub.s32 %s34, %s46
      %s296 = ssub.s32 %s35, %s42
      %s297 = sor.u32 %s295, %s296
      %p298 = scmp.eq.s32.totalorder %s297, 0
      %s300 = sadd.s32 %s299, 1
      %s301 = scalar_select %p298, %s299, %s300
      %p304 = pneg %p298
      %p305 = scmp.eq.s32.totalorder %s27, 3
      %p306 = por %p304, %p305
      %p307 = scmp.ne.s32.totalorder %s299, %s302
      %p308 = scmp.eq.s32.totalorder %s27, 0
      %p309 = por %p307, %p308
      %p310 = scmp.ne.s32.totalorder %s299, %s302
      %p311 = scmp.eq.s32.totalorder %s32, 3
      %p312 = por %p310, %p311
      %p313 = scmp.ne.s32.totalorder %s302, %s303
      %p314 = scmp.eq.s32.totalorder %s32, 0
      %p315 = por %p313, %p314
      %p316 = scmp.ne.s32.totalorder %s302, %s303
      %p317 = scmp.eq.s32.totalorder %s33, 3
      %p318 = por %p316, %p317
      %p320 = scmp.ne.s32.totalorder %s303, %s319
      %p321 = scmp.eq.s32.totalorder %s33, 0
      %p322 = por %p320, %p321
      %p323 = scmp.le.s32.totalorder 1, %s27
      %p324 = scmp.lt.s32.totalorder %s27, 5
      %p325 = pnand %p323, %p324
      %p326 = pneg %p325
      // Predicated region
      $region9: #{tpu_custom_call.1} parent=5 // pred_check
        _
      $region10: #{tpu_custom_call.1} parent=5 // pred_check_branch
        %328 = sbr.rel (%p325) target = $region12
      $region11: #{tpu_custom_call.1} parent=5 // pred_region
        %s329 = ssub.s32 %s27, 1
        // Predicated region
        $region13: #{tpu_custom_call.1} parent=11 // pred_check
          %p330 = pneg %p140
        $region14: #{tpu_custom_call.1} parent=11 // pred_check_branch
          %332 = sbr.rel (%p330) target = $region16
        $region15: #{tpu_custom_call.1} parent=11 // pred_region
          %s334 = ssub.s32 2048, 2048
          %335 = vsyncadd [#allocation9], %s334
          %s336 = sshll.u32 [#allocation8], 4
          %s337 = int_to_ptr.vmem [resolvable:$true] %s336
          %342 = dma.hbm_to_vmem [thread:$0]  %s3, 2048, %s337, [#allocation9], 128, 128, 8
        $region16: #{tpu_custom_call.1} parent=11 // pred_fallthru
          _
        // Predicated region
        $region17: #{tpu_custom_call.1} parent=11 // pred_check
          %p343 = pneg %p161
        $region18: #{tpu_custom_call.1} parent=11 // pred_check_branch
          %345 = sbr.rel (%p343) target = $region20
        $region19: #{tpu_custom_call.1} parent=11 // pred_region
          %s347 = ssub.s32 2048, 2048
          %348 = vsyncadd [#allocation9], %s347
          %s349 = sshll.u32 [#allocation10], 4
          %s350 = int_to_ptr.vmem [resolvable:$true] %s349
          %355 = dma.hbm_to_vmem [thread:$0]  %s4, 2048, %s350, [#allocation9], 128, 128, 8
        $region20: #{tpu_custom_call.1} parent=11 // pred_fallthru
          _
        // Predicated region
        $region21: #{tpu_custom_call.1} parent=11 // pred_check
          %p356 = pneg %p182
        $region22: #{tpu_custom_call.1} parent=11 // pred_check_branch
          %358 = sbr.rel (%p356) target = $region24
        $region23: #{tpu_custom_call.1} parent=11 // pred_region
          _
        $region24: #{tpu_custom_call.1} parent=11 // pred_fallthru
          _
        // Predicated region
        $region25: #{tpu_custom_call.1} parent=11 // pred_check
          %p359 = pneg %p203
        $region26: #{tpu_custom_call.1} parent=11 // pred_check_branch
          %361 = sbr.rel (%p359) target = $region28
        $region27: #{tpu_custom_call.1} parent=11 // pred_region
          _
        $region28: #{tpu_custom_call.1} parent=11 // pred_fallthru
          _
        // Predicated region
        $region29: #{tpu_custom_call.1} parent=11 // pred_check
          %p362 = pneg %p224
        $region30: #{tpu_custom_call.1} parent=11 // pred_check_branch
          %364 = sbr.rel (%p362) target = $region32
        $region31: #{tpu_custom_call.1} parent=11 // pred_region
          _
        $region32: #{tpu_custom_call.1} parent=11 // pred_fallthru
          _
        // Predicated region
        $region33: #{tpu_custom_call.1} parent=11 // pred_check
          %p365 = pneg %p245
        $region34: #{tpu_custom_call.1} parent=11 // pred_check_branch
          %367 = sbr.rel (%p365) target = $region36
        $region35: #{tpu_custom_call.1} parent=11 // pred_region
          _
        $region36: #{tpu_custom_call.1} parent=11 // pred_fallthru
          _
        // Predicated region
        $region37: #{tpu_custom_call.1} parent=11 // pred_check
          %p368 = pneg %p266
        $region38: #{tpu_custom_call.1} parent=11 // pred_check_branch
          %370 = sbr.rel (%p368) target = $region40
        $region39: #{tpu_custom_call.1} parent=11 // pred_region
          _
        $region40: #{tpu_custom_call.1} parent=11 // pred_fallthru
          _
        // Predicated region
        $region41: #{tpu_custom_call.1} parent=11 // pred_check
          %p371 = pneg %p287
        $region42: #{tpu_custom_call.1} parent=11 // pred_check_branch
          %373 = sbr.rel (%p371) target = $region44
        $region43: #{tpu_custom_call.1} parent=11 // pred_region
          _
        $region44: #{tpu_custom_call.1} parent=11 // pred_fallthru
          _
      $region12: #{tpu_custom_call.1} parent=5 // pred_fallthru
        _
      %p374 = scmp.lt.s32.totalorder %s27, 4
      // Predicated region
      $region45: #{tpu_custom_call.1} parent=5 // pred_check
        %p375 = pneg %p374
      $region46: #{tpu_custom_call.1} parent=5 // pred_check_branch
        %377 = sbr.rel (%p375) target = $region48
      $region47: #{tpu_custom_call.1} parent=5 // pred_region
        // Predicated region
        $region49: #{tpu_custom_call.1} parent=47 // pred_check
          %p378 = pneg %p61
        $region50: #{tpu_custom_call.1} parent=47 // pred_check_branch
          %380 = sbr.rel (%p378) target = $region52
        $region51: #{tpu_custom_call.1} parent=47 // pred_region
          %s381 = sand.u32 %s51, 1
          %s382 = scalar_lea.sflag [#allocation3], %s381
          %s383 = sand.u32 %s51, 1
          %s384 = smul.addr %s383, 8
          %s385 = scalar_lea.vmem [#allocation2], %s384
          %s387 = ssub.s32 128, 128
          %388 = vsyncadd %s382, %s387
          %s389 = smul.addr %s34, 2
          %s390 = sadd.s32 %s35, %s389
          %s391 = smul.addr %s390, 128
          %s392 = scalar_lea.hbm %s0, %s391
          %s394 = sshll.u32 %s385, 4
          %s395 = int_to_ptr.vmem [resolvable:$true] %s394
          %397 = dma.hbm_to_vmem [thread:$0]  %s392, 128, %s395, %s382
        $region52: #{tpu_custom_call.1} parent=47 // pred_fallthru
          _
        // Predicated region
        $region53: #{tpu_custom_call.1} parent=47 // pred_check
          %p398 = pneg %p87
        $region54: #{tpu_custom_call.1} parent=47 // pred_check_branch
          %400 = sbr.rel (%p398) target = $region56
        $region55: #{tpu_custom_call.1} parent=47 // pred_region
          %s401 = sand.u32 %s27, 1
          %s402 = scalar_lea.sflag [#allocation6], %s401
          %s403 = sand.u32 %s77, 1
          %s404 = smul.addr %s403, 8
          %s405 = scalar_lea.vmem [#allocation5], %s404
          %s407 = ssub.s32 128, 128
          %408 = vsyncadd %s402, %s407
          %s409 = smul.addr %s34, 128
          %s410 = scalar_lea.hbm %s1, %s409
          %s412 = sshll.u32 %s405, 4
          %s413 = int_to_ptr.vmem [resolvable:$true] %s412
          %415 = dma.hbm_to_vmem [thread:$0]  %s410, 128, %s413, %s402
        $region56: #{tpu_custom_call.1} parent=47 // pred_fallthru
          _
        // Predicated region
        $region57: #{tpu_custom_call.1} parent=47 // pred_check
          %p416 = pneg %p113
        $region58: #{tpu_custom_call.1} parent=47 // pred_check_branch
          %418 = sbr.rel (%p416) target = $region60
        $region59: #{tpu_custom_call.1} parent=47 // pred_region
          %s419 = sand.u32 %s27, 1
          %s420 = scalar_lea.sflag [#allocation6], %s419
          %s421 = sand.u32 %s103, 1
          %s422 = smul.addr %s421, 8
          %s423 = scalar_lea.vmem [#allocation7], %s422
          %s425 = ssub.s32 128, 128
          %426 = vsyncadd %s420, %s425
          %s427 = smul.addr %s34, 128
          %s428 = scalar_lea.hbm %s2, %s427
          %s430 = sshll.u32 %s423, 4
          %s431 = int_to_ptr.vmem [resolvable:$true] %s430
          %433 = dma.hbm_to_vmem [thread:$0]  %s428, 128, %s431, %s420
        $region60: #{tpu_custom_call.1} parent=47 // pred_fallthru
          _
      $region48: #{tpu_custom_call.1} parent=5 // pred_fallthru
        _
      %p434 = scmp.le.s32.totalorder 1, %s27
      %p435 = scmp.lt.s32.totalorder %s27, 5
      %p436 = pnand %p434, %p435
      %p437 = pneg %p436
      // Predicated region
      $region61: #{tpu_custom_call.1} parent=5 // pred_check
        _
      $region62: #{tpu_custom_call.1} parent=5 // pred_check_branch
        %439 = sbr.rel (%p436) target = $region64
      $region63: #{tpu_custom_call.1} parent=5 // pred_region
        %s440 = ssub.s32 %s27, 1
        %s441 = sand.u32 %s54, 1
        %s442 = scalar_lea.sflag [#allocation3], %s441
        %s443 = sand.u32 %s54, 1
        %s444 = smul.addr %s443, 8
        %s445 = scalar_lea.vmem [#allocation2], %s444
        // Predicated region
        $region65: #{tpu_custom_call.1} parent=63 // pred_check
          %p446 = pneg %p67
        $region66: #{tpu_custom_call.1} parent=63 // pred_check_branch
          %448 = sbr.rel (%p446) target = $region68
        $region67: #{tpu_custom_call.1} parent=63 // pred_region
          %449 = dma.done %s442, 128
        $region68: #{tpu_custom_call.1} parent=63 // pred_fallthru
          _
        %s450 = sand.u32 %s32, 1
        %s451 = scalar_lea.sflag [#allocation6], %s450
        %s452 = sand.u32 %s80, 1
        %s453 = smul.addr %s452, 8
        %s454 = scalar_lea.vmem [#allocation5], %s453
        // Predicated region
        $region69: #{tpu_custom_call.1} parent=63 // pred_check
          %p455 = pneg %p93
        $region70: #{tpu_custom_call.1} parent=63 // pred_check_branch
          %457 = sbr.rel (%p455) target = $region72
        $region71: #{tpu_custom_call.1} parent=63 // pred_region
          %458 = dma.done %s451, 128
        $region72: #{tpu_custom_call.1} parent=63 // pred_fallthru
          _
        %s459 = sand.u32 %s32, 1
        %s460 = scalar_lea.sflag [#allocation6], %s459
        %s461 = sand.u32 %s106, 1
        %s462 = smul.addr %s461, 8
        %s463 = scalar_lea.vmem [#allocation7], %s462
        // Predicated region
        $region73: #{tpu_custom_call.1} parent=63 // pred_check
          %p464 = pneg %p119
        $region74: #{tpu_custom_call.1} parent=63 // pred_check_branch
          %466 = sbr.rel (%p464) target = $region76
        $region75: #{tpu_custom_call.1} parent=63 // pred_region
          %467 = dma.done %s460, 128
        $region76: #{tpu_custom_call.1} parent=63 // pred_fallthru
          _
        // Predicated region
        $region77: #{tpu_custom_call.1} parent=63 // pred_check
          %p468 = pneg %p140
        $region78: #{tpu_custom_call.1} parent=63 // pred_check_branch
          %470 = sbr.rel (%p468) target = $region80
        $region79: #{tpu_custom_call.1} parent=63 // pred_region
          %471 = dma.done [#allocation9], 2048
        $region80: #{tpu_custom_call.1} parent=63 // pred_fallthru
          _
        // Predicated region
        $region81: #{tpu_custom_call.1} parent=63 // pred_check
          %p472 = pneg %p161
        $region82: #{tpu_custom_call.1} parent=63 // pred_check_branch
          %474 = sbr.rel (%p472) target = $region84
        $region83: #{tpu_custom_call.1} parent=63 // pred_region
          %475 = dma.done [#allocation9], 2048
        $region84: #{tpu_custom_call.1} parent=63 // pred_fallthru
          _
        %s476 = sand.u32 %s54, 1
        %s477 = scalar_lea.sflag [#allocation3], %s476
        %s478 = sand.u32 %s54, 1
        %s479 = smul.addr %s478, 8
        %s480 = scalar_lea.vmem [#allocation2], %s479
        %p481 = pneg %p67
        %p482 = pneg %p64
        %s483 = sand.u32 %s32, 1
        %s484 = scalar_lea.sflag [#allocation6], %s483
        %s485 = sand.u32 %s80, 1
        %s486 = smul.addr %s485, 8
        %s487 = scalar_lea.vmem [#allocation5], %s486
        %p488 = pneg %p93
        %p489 = pneg %p90
        %s490 = sand.u32 %s32, 1
        %s491 = scalar_lea.sflag [#allocation6], %s490
        %s492 = sand.u32 %s106, 1
        %s493 = smul.addr %s492, 8
        %s494 = scalar_lea.vmem [#allocation7], %s493
        %p495 = pneg %p119
        %p496 = pneg %p116
        %p497 = pneg %p140
        %p498 = pneg %p137
        %p499 = pneg %p161
        %p500 = pneg %p158
        %p501 = pneg %p182
        %p502 = pneg %p179
        %p503 = pneg %p203
        %p504 = pneg %p200
        %p505 = pneg %p224
        %p506 = pneg %p221
        %p507 = pneg %p245
        %p508 = pneg %p242
        %p509 = pneg %p266
        %p510 = pneg %p263
        %p511 = pneg %p287
        %p512 = pneg %p284
        %p513 = pneg %p315
        %p514 = pneg %p312
        %s515 = sand.u32 %s302, 1
        %s516 = scalar_lea.sflag [#allocation4], %s515
        %s517 = sand.u32 %s302, 1
        %s518 = smul.addr %s517, 8
        %s519 = scalar_lea.vmem [#allocation11], %s518
        %v520 = vld [vmem:[%s445] sm:$0xff]
        %v521 = vld [vmem:[%s454] sm:$0xff]
        %v522 = vld [vmem:[%s463] sm:$0xff]
        %523 = vmatprep.subr.mxu0 0.0
        %524 = vmatpush1.xpose.msra.mxu0 0.0
        %525 = vmatprep.subr.mxu0 0.0
        %526 = vmatpush1.xpose.msra.mxu0 0.0
        %527 = vmatprep.subr.mxu0 0.0
        %528 = vmatpush1.xpose.msra.mxu0 0.0
        %529 = vmatprep.subr.mxu0 0.0
        %530 = vmatpush1.xpose.msra.mxu0 0.0
        %531 = vmatprep.subr.mxu0 0.0
        %532 = vmatpush1.xpose.msra.mxu0 0.0
        %533 = vmatprep.subr.mxu0 0.0
        %534 = vmatpush1.xpose.msra.mxu0 0.0
        %535 = vmatprep.subr.mxu0 0.0
        %536 = vmatpush1.xpose.msra.mxu0 0.0
        %537 = vmatprep.subr.mxu0 0.0
        %538 = vmatpush1.xpose.msra.mxu0 0.0
        %539 = vmatprep.subr.mxu0 0.0
        %540 = vmatpush1.xpose.msra.mxu0 0.0
        %541 = vmatprep.subr.mxu0 0.0
        %542 = vmatpush1.xpose.msra.mxu0 0.0
        %543 = vmatprep.subr.mxu0 0.0
        %544 = vmatpush1.xpose.msra.mxu0 0.0
        %545 = vmatprep.subr.mxu0 0.0
        %546 = vmatpush1.xpose.msra.mxu0 0.0
        %547 = vmatprep.subr.mxu0 0.0
        %548 = vmatpush1.xpose.msra.mxu0 0.0
        %549 = vmatprep.subr.mxu0 0.0
        %550 = vmatpush1.xpose.msra.mxu0 0.0
        %551 = vmatprep.subr.mxu0 0.0
        %552 = vmatpush1.xpose.msra.mxu0 0.0
        %553 = vmatprep.subr.mxu0 0.0
        %554 = vmatpush1.xpose.msra.mxu0 %v521
        %555 = vmatprep.subr.mxu0 0.0
        %556 = vmatpush2.xpose.msra.mxu0 0.0
        %557 = vmatprep.subr.mxu0 0.0
        %558 = vmatpush2.xpose.msra.mxu0 0.0
        %559 = vmatprep.subr.mxu0 0.0
        %560 = vmatpush2.xpose.msra.mxu0 0.0
        %561 = vmatprep.subr.mxu0 0.0
        %562 = vmatpush2.xpose.msra.mxu0 0.0
        %563 = vmatprep.subr.mxu0 0.0
        %564 = vmatpush2.xpose.msra.mxu0 0.0
        %565 = vmatprep.subr.mxu0 0.0
        %566 = vmatpush2.xpose.msra.mxu0 0.0
        %567 = vmatprep.subr.mxu0 0.0
        %568 = vmatpush2.xpose.msra.mxu0 0.0
        %569 = vmatprep.subr.mxu0 0.0
        %570 = vmatpush2.xpose.msra.mxu0 0.0
        %571 = vmatprep.subr.mxu0 0.0
        %572 = vmatpush2.xpose.msra.mxu0 0.0
        %573 = vmatprep.subr.mxu0 0.0
        %574 = vmatpush2.xpose.msra.mxu0 0.0
        %575 = vmatprep.subr.mxu0 0.0
        %576 = vmatpush2.xpose.msra.mxu0 0.0
        %577 = vmatprep.subr.mxu0 0.0
        %578 = vmatpush2.xpose.msra.mxu0 0.0
        %579 = vmatprep.subr.mxu0 0.0
        %580 = vmatpush2.xpose.msra.mxu0 0.0
        %581 = vmatprep.subr.mxu0 0.0
        %582 = vmatpush2.xpose.msra.mxu0 0.0
        %583 = vmatprep.subr.mxu0 0.0
        %584 = vmatpush2.xpose.msra.mxu0 0.0
        %585 = vmatprep.subr.mxu0 0.0
        %586 = vmatpush2.xpose.msra.mxu0 0.0
        %587 = vmatprep.mubr.f32.mxu0 0.0
        %588 = vmatmul.mubr.f32.gmra.mxu0 %v520
        %v589 = vpop.f32.mrf.mxu0
        %v590 = vadd.f32 0.0, %v589
        %v591 = vpop.f32.mrf.mxu0
        %592 = vdwg.mxu0
        %vm593 = vcmask 64512
        %v594 = vsel %vm593, %v590, -inf
        %595 = vmax.xlane.f32.xlu0 %v594
        %v596 = vpop.xlane.xlu0 %595
        %v597 = vsub.f32 %v590, %v596
        %v598 = vmul.f32 %v597, 1.442695
        %v599 = vpow.pop %v598
        %v600 = vsel %vm593, %v599, 0.0
        %601 = vadd.xlane.f32.xlu0 %v600
        %v602 = vpop.xlane.xlu0 %601
        %v603 = vrcp.pop %v602
        %v604 = vmul.f32 %v599, %v603
        %v606 = vsel %vm593, %v604, 0
        %608 = vmatprep.subr.mxu0 0.0
        %609 = vmatpush1.msra.mxu0 0.0
        %610 = vmatprep.subr.mxu0 0.0
        %611 = vmatpush1.msra.mxu0 0.0
        %612 = vmatprep.subr.mxu0 0.0
        %613 = vmatpush1.msra.mxu0 0.0
        %614 = vmatprep.subr.mxu0 0.0
        %615 = vmatpush1.msra.mxu0 0.0
        %616 = vmatprep.subr.mxu0 0.0
        %617 = vmatpush1.msra.mxu0 0.0
        %618 = vmatprep.subr.mxu0 0.0
        %619 = vmatpush1.msra.mxu0 0.0
        %620 = vmatprep.subr.mxu0 0.0
        %621 = vmatpush1.msra.mxu0 0.0
        %622 = vmatprep.subr.mxu0 0.0
        %623 = vmatpush1.msra.mxu0 0.0
        %624 = vmatprep.subr.mxu0 0.0
        %625 = vmatpush1.msra.mxu0 0.0
        %626 = vmatprep.subr.mxu0 0.0
        %627 = vmatpush1.msra.mxu0 0.0
        %628 = vmatprep.subr.mxu0 0.0
        %629 = vmatpush1.msra.mxu0 0.0
        %630 = vmatprep.subr.mxu0 0.0
        %631 = vmatpush1.msra.mxu0 0.0
        %632 = vmatprep.subr.mxu0 0.0
        %633 = vmatpush1.msra.mxu0 0.0
        %634 = vmatprep.subr.mxu0 0.0
        %635 = vmatpush1.msra.mxu0 0.0
        %636 = vmatprep.subr.mxu0 0.0
        %637 = vmatpush1.msra.mxu0 0.0
        %638 = vmatprep.subr.mxu0 0.0
        %639 = vmatpush1.msra.mxu0 %v522
        %640 = vmatprep.subr.mxu0 0.0
        %641 = vmatpush2.msra.mxu0 0.0
        %642 = vmatprep.subr.mxu0 0.0
        %643 = vmatpush2.msra.mxu0 0.0
        %644 = vmatprep.subr.mxu0 0.0
        %645 = vmatpush2.msra.mxu0 0.0
        %646 = vmatprep.subr.mxu0 0.0
        %647 = vmatpush2.msra.mxu0 0.0
        %648 = vmatprep.subr.mxu0 0.0
        %649 = vmatpush2.msra.mxu0 0.0
        %650 = vmatprep.subr.mxu0 0.0
        %651 = vmatpush2.msra.mxu0 0.0
        %652 = vmatprep.subr.mxu0 0.0
        %653 = vmatpush2.msra.mxu0 0.0
        %654 = vmatprep.subr.mxu0 0.0
        %655 = vmatpush2.msra.mxu0 0.0
        %656 = vmatprep.subr.mxu0 0.0
        %657 = vmatpush2.msra.mxu0 0.0
        %658 = vmatprep.subr.mxu0 0.0
        %659 = vmatpush2.msra.mxu0 0.0
        %660 = vmatprep.subr.mxu0 0.0
        %661 = vmatpush2.msra.mxu0 0.0
        %662 = vmatprep.subr.mxu0 0.0
        %663 = vmatpush2.msra.mxu0 0.0
        %664 = vmatprep.subr.mxu0 0.0
        %665 = vmatpush2.msra.mxu0 0.0
        %666 = vmatprep.subr.mxu0 0.0
        %667 = vmatpush2.msra.mxu0 0.0
        %668 = vmatprep.subr.mxu0 0.0
        %669 = vmatpush2.msra.mxu0 0.0
        %670 = vmatprep.subr.mxu0 0.0
        %671 = vmatpush2.msra.mxu0 0.0
        %672 = vmatprep.mubr.f32.mxu0 0.0
        %673 = vmatmul.mubr.f32.gmra.mxu0 %v606
        %v674 = vpop.f32.mrf.mxu0
        %v675 = vadd.f32 0.0, %v674
        %v676 = vpop.f32.mrf.mxu0
        %677 = vdwg.mxu0
        %v678 = vadd.f32 %v520, %v675
        %v679 = vld [vmem:[%s7] sm:$0x1]
        %v680 = vld [vmem:[%s8] sm:$0x1]
        %681 = vadd.xlane.f32.xlu0 %v678
        %v682 = vpop.xlane.xlu0 %681
        %v683 = vmul.f32 %v682, 0.03125
        %v684 = vsub.f32 %v678, %v683
        %v685 = vmul.f32 %v684, %v684
        %686 = vadd.xlane.f32.xlu0 %v685
        %v687 = vpop.xlane.xlu0 %686
        %v688 = vmul.f32 %v683, %v683
        %v689 = vmul.f32 %v688, 96.0
        %v690 = vsub.f32 %v687, %v689
        %v691 = vmul.f32 %v690, 0.03125
        %v692 = vadd.f32 %v691, 1e-05
        %v693 = vrsqrt.pop %v692
        %v694 = vmul.f32 %v684, %v693
        %v696 = vlaneseq
        %v697 = vshrl.u32 %v696, 7
        %v698 = vsub.s32 0, %v697
        %v699 = vrot.slane %v679, %v698
        %v701 = vmul.f32 %v694, %v699
        %v703 = vlaneseq
        %v704 = vshrl.u32 %v703, 7
        %v705 = vsub.s32 0, %v704
        %v706 = vrot.slane %v680, %v705
        %v708 = vadd.f32 %v701, %v706
        %v709 = vld [vmem:[#allocation8] sm:$0xff]
        %v710 = vld [vmem:[#allocation8 + $0x8] sm:$0xff]
        %v711 = vld [vmem:[#allocation8 + $0x10] sm:$0xff]
        %v712 = vld [vmem:[#allocation8 + $0x18] sm:$0xff]
        %v713 = vld [vmem:[#allocation8 + $0x20] sm:$0xff]
        %v714 = vld [vmem:[#allocation8 + $0x28] sm:$0xff]
        %v715 = vld [vmem:[#allocation8 + $0x30] sm:$0xff]
        %v716 = vld [vmem:[#allocation8 + $0x38] sm:$0xff]
        %v717 = vld [vmem:[#allocation8 + $0x40] sm:$0xff]
        %v718 = vld [vmem:[#allocation8 + $0x48] sm:$0xff]
        %v719 = vld [vmem:[#allocation8 + $0x50] sm:$0xff]
        %v720 = vld [vmem:[#allocation8 + $0x58] sm:$0xff]
        %v721 = vld [vmem:[#allocation8 + $0x60] sm:$0xff]
        %v722 = vld [vmem:[#allocation8 + $0x68] sm:$0xff]
        %v723 = vld [vmem:[#allocation8 + $0x70] sm:$0xff]
        %v724 = vld [vmem:[#allocation8 + $0x78] sm:$0xff]
        %v725 = vld [vmem:[%s5] sm:$0x1]
        %v727 = vlaneseq
        %v728 = vshrl.u32 %v727, 7
        %v729 = vsub.s32 0, %v728
        %v730 = vrot.slane %v725, %v729
        %732 = vmatprep.subr.mxu0 0.0
        %733 = vmatpush1.msra.mxu0 %v724
        %734 = vmatprep.subr.mxu0 0.0
        %735 = vmatpush1.msra.mxu0 %v723
        %736 = vmatprep.subr.mxu0 0.0
        %737 = vmatpush1.msra.mxu0 %v722
        %738 = vmatprep.subr.mxu0 0.0
        %739 = vmatpush1.msra.mxu0 %v721
        %740 = vmatprep.subr.mxu0 0.0
        %741 = vmatpush1.msra.mxu0 %v720
        %742 = vmatprep.subr.mxu0 0.0
        %743 = vmatpush1.msra.mxu0 %v719
        %744 = vmatprep.subr.mxu0 0.0
        %745 = vmatpush1.msra.mxu0 %v718
        %746 = vmatprep.subr.mxu0 0.0
        %747 = vmatpush1.msra.mxu0 %v717
        %748 = vmatprep.subr.mxu0 0.0
        %749 = vmatpush1.msra.mxu0 %v716
        %750 = vmatprep.subr.mxu0 0.0
        %751 = vmatpush1.msra.mxu0 %v715
        %752 = vmatprep.subr.mxu0 0.0
        %753 = vmatpush1.msra.mxu0 %v714
        %754 = vmatprep.subr.mxu0 0.0
        %755 = vmatpush1.msra.mxu0 %v713
        %756 = vmatprep.subr.mxu0 0.0
        %757 = vmatpush1.msra.mxu0 %v712
        %758 = vmatprep.subr.mxu0 0.0
        %759 = vmatpush1.msra.mxu0 %v711
        %760 = vmatprep.subr.mxu0 0.0
        %761 = vmatpush1.msra.mxu0 %v710
        %762 = vmatprep.subr.mxu0 0.0
        %763 = vmatpush1.msra.mxu0 %v709
        %764 = vmatprep.subr.mxu0 0.0
        %765 = vmatpush2.msra.mxu0 0.0
        %766 = vmatprep.subr.mxu0 0.0
        %767 = vmatpush2.msra.mxu0 0.0
        %768 = vmatprep.subr.mxu0 0.0
        %769 = vmatpush2.msra.mxu0 0.0
        %770 = vmatprep.subr.mxu0 0.0
        %771 = vmatpush2.msra.mxu0 0.0
        %772 = vmatprep.subr.mxu0 0.0
        %773 = vmatpush2.msra.mxu0 0.0
        %774 = vmatprep.subr.mxu0 0.0
        %775 = vmatpush2.msra.mxu0 0.0
        %776 = vmatprep.subr.mxu0 0.0
        %777 = vmatpush2.msra.mxu0 0.0
        %778 = vmatprep.subr.mxu0 0.0
        %779 = vmatpush2.msra.mxu0 0.0
        %780 = vmatprep.subr.mxu0 0.0
        %781 = vmatpush2.msra.mxu0 0.0
        %782 = vmatprep.subr.mxu0 0.0
        %783 = vmatpush2.msra.mxu0 0.0
        %784 = vmatprep.subr.mxu0 0.0
        %785 = vmatpush2.msra.mxu0 0.0
        %786 = vmatprep.subr.mxu0 0.0
        %787 = vmatpush2.msra.mxu0 0.0
        %788 = vmatprep.subr.mxu0 0.0
        %789 = vmatpush2.msra.mxu0 0.0
        %790 = vmatprep.subr.mxu0 0.0
        %791 = vmatpush2.msra.mxu0 0.0
        %792 = vmatprep.subr.mxu0 0.0
        %793 = vmatpush2.msra.mxu0 0.0
        %794 = vmatprep.subr.mxu0 0.0
        %795 = vmatpush2.msra.mxu0 0.0
        %796 = vmatprep.mubr.f32.mxu0 0.0
        %797 = vmatmul.mubr.f32.gmra.mxu0 %v708
        %v798 = vpop.f32.mrf.mxu0
        %v799 = vadd.f32 %v730, %v798
        %v800 = vpop.f32.mrf.mxu0
        %801 = vdwg.mxu0
        %v802 = vmax.f32 %v799, 0.0
        %v803 = vld [vmem:[#allocation10] sm:$0xff]
        %v804 = vld [vmem:[#allocation10 + $0x8] sm:$0xff]
        %v805 = vld [vmem:[#allocation10 + $0x10] sm:$0xff]
        %v806 = vld [vmem:[#allocation10 + $0x18] sm:$0xff]
        %v807 = vld [vmem:[#allocation10 + $0x20] sm:$0xff]
        %v808 = vld [vmem:[#allocation10 + $0x28] sm:$0xff]
        %v809 = vld [vmem:[#allocation10 + $0x30] sm:$0xff]
        %v810 = vld [vmem:[#allocation10 + $0x38] sm:$0xff]
        %v811 = vld [vmem:[#allocation10 + $0x40] sm:$0xff]
        %v812 = vld [vmem:[#allocation10 + $0x48] sm:$0xff]
        %v813 = vld [vmem:[#allocation10 + $0x50] sm:$0xff]
        %v814 = vld [vmem:[#allocation10 + $0x58] sm:$0xff]
        %v815 = vld [vmem:[#allocation10 + $0x60] sm:$0xff]
        %v816 = vld [vmem:[#allocation10 + $0x68] sm:$0xff]
        %v817 = vld [vmem:[#allocation10 + $0x70] sm:$0xff]
        %v818 = vld [vmem:[#allocation10 + $0x78] sm:$0xff]
        %v819 = vld [vmem:[%s6] sm:$0x1]
        %v821 = vlaneseq
        %v822 = vshrl.u32 %v821, 7
        %v823 = vsub.s32 0, %v822
        %v824 = vrot.slane %v819, %v823
        %826 = vmatprep.subr.mxu0 0.0
        %827 = vmatpush1.msra.mxu0 %v818
        %828 = vmatprep.subr.mxu0 0.0
        %829 = vmatpush1.msra.mxu0 %v817
        %830 = vmatprep.subr.mxu0 0.0
        %831 = vmatpush1.msra.mxu0 %v816
        %832 = vmatprep.subr.mxu0 0.0
        %833 = vmatpush1.msra.mxu0 %v815
        %834 = vmatprep.subr.mxu0 0.0
        %835 = vmatpush1.msra.mxu0 %v814
        %836 = vmatprep.subr.mxu0 0.0
        %837 = vmatpush1.msra.mxu0 %v813
        %838 = vmatprep.subr.mxu0 0.0
        %839 = vmatpush1.msra.mxu0 %v812
        %840 = vmatprep.subr.mxu0 0.0
        %841 = vmatpush1.msra.mxu0 %v811
        %842 = vmatprep.subr.mxu0 0.0
        %843 = vmatpush1.msra.mxu0 %v810
        %844 = vmatprep.subr.mxu0 0.0
        %845 = vmatpush1.msra.mxu0 %v809
        %846 = vmatprep.subr.mxu0 0.0
        %847 = vmatpush1.msra.mxu0 %v808
        %848 = vmatprep.subr.mxu0 0.0
        %849 = vmatpush1.msra.mxu0 %v807
        %850 = vmatprep.subr.mxu0 0.0
        %851 = vmatpush1.msra.mxu0 %v806
        %852 = vmatprep.subr.mxu0 0.0
        %853 = vmatpush1.msra.mxu0 %v805
        %854 = vmatprep.subr.mxu0 0.0
        %855 = vmatpush1.msra.mxu0 %v804
        %856 = vmatprep.subr.mxu0 0.0
        %857 = vmatpush1.msra.mxu0 %v803
        %858 = vmatprep.subr.mxu0 0.0
        %859 = vmatpush2.msra.mxu0 0.0
        %860 = vmatprep.subr.mxu0 0.0
        %861 = vmatpush2.msra.mxu0 0.0
        %862 = vmatprep.subr.mxu0 0.0
        %863 = vmatpush2.msra.mxu0 0.0
        %864 = vmatprep.subr.mxu0 0.0
        %865 = vmatpush2.msra.mxu0 0.0
        %866 = vmatprep.subr.mxu0 0.0
        %867 = vmatpush2.msra.mxu0 0.0
        %868 = vmatprep.subr.mxu0 0.0
        %869 = vmatpush2.msra.mxu0 0.0
        %870 = vmatprep.subr.mxu0 0.0
        %871 = vmatpush2.msra.mxu0 0.0
        %872 = vmatprep.subr.mxu0 0.0
        %873 = vmatpush2.msra.mxu0 0.0
        %874 = vmatprep.subr.mxu0 0.0
        %875 = vmatpush2.msra.mxu0 0.0
        %876 = vmatprep.subr.mxu0 0.0
        %877 = vmatpush2.msra.mxu0 0.0
        %878 = vmatprep.subr.mxu0 0.0
        %879 = vmatpush2.msra.mxu0 0.0
        %880 = vmatprep.subr.mxu0 0.0
        %881 = vmatpush2.msra.mxu0 0.0
        %882 = vmatprep.subr.mxu0 0.0
        %883 = vmatpush2.msra.mxu0 0.0
        %884 = vmatprep.subr.mxu0 0.0
        %885 = vmatpush2.msra.mxu0 0.0
        %886 = vmatprep.subr.mxu0 0.0
        %887 = vmatpush2.msra.mxu0 0.0
        %888 = vmatprep.subr.mxu0 0.0
        %889 = vmatpush2.msra.mxu0 0.0
        %890 = vmatprep.mubr.f32.mxu0 0.0
        %891 = vmatmul.mubr.f32.gmra.mxu0 %v802
        %v892 = vpop.f32.mrf.mxu0
        %v893 = vadd.f32 %v824, %v892
        %v894 = vpop.f32.mrf.mxu0
        %895 = vdwg.mxu0
        %v896 = vld [vmem:[%s9] sm:$0x1]
        %v897 = vld [vmem:[%s10] sm:$0x1]
        %898 = vadd.xlane.f32.xlu0 %v893
        %v899 = vpop.xlane.xlu0 %898
        %v900 = vmul.f32 %v899, 0.03125
        %v901 = vsub.f32 %v893, %v900
        %v902 = vmul.f32 %v901, %v901
        %903 = vadd.xlane.f32.xlu0 %v902
        %v904 = vpop.xlane.xlu0 %903
        %v905 = vmul.f32 %v900, %v900
        %v906 = vmul.f32 %v905, 96.0
        %v907 = vsub.f32 %v904, %v906
        %v908 = vmul.f32 %v907, 0.03125
        %v909 = vadd.f32 %v908, 1e-05
        %v910 = vrsqrt.pop %v909
        %v911 = vmul.f32 %v901, %v910
        %v913 = vlaneseq
        %v914 = vshrl.u32 %v913, 7
        %v915 = vsub.s32 0, %v914
        %v916 = vrot.slane %v896, %v915
        %v918 = vmul.f32 %v911, %v916
        %v920 = vlaneseq
        %v921 = vshrl.u32 %v920, 7
        %v922 = vsub.s32 0, %v921
        %v923 = vrot.slane %v897, %v922
        %v925 = vadd.f32 %v918, %v923
        %926 = vst [vmem:[%s519] sm:$0xff] %v925
        %s927 = sand.u32 %s302, 1
        %s928 = scalar_lea.sflag [#allocation4], %s927
        %s929 = sand.u32 %s302, 1
        %s930 = smul.addr %s929, 8
        %s931 = scalar_lea.vmem [#allocation11], %s930
        // Predicated region
        $region85: #{tpu_custom_call.1} parent=63 // pred_check
          %p932 = pneg %p312
        $region86: #{tpu_custom_call.1} parent=63 // pred_check_branch
          %934 = sbr.rel (%p932) target = $region88
        $region87: #{tpu_custom_call.1} parent=63 // pred_region
          %s936 = ssub.s32 128, 128
          %937 = vsyncadd %s928, %s936
          %s938 = smul.addr %s36, 2
          %s939 = sadd.s32 %s37, %s938
          %s940 = smul.addr %s939, 128
          %s941 = scalar_lea.hbm %s11, %s940
          %s943 = sshll.u32 %s931, 4
          %s944 = int_to_ptr.vmem [resolvable:$true] %s943
          %946 = dma.vmem_to_hbm [thread:$0]  %s944, 128, %s941, %s928
        $region88: #{tpu_custom_call.1} parent=63 // pred_fallthru
          _
      $region64: #{tpu_custom_call.1} parent=5 // pred_fallthru
        _
      %p947 = scmp.le.s32.totalorder 2, %s27
      // Predicated region
      $region89: #{tpu_custom_call.1} parent=5 // pred_check
        %p948 = pneg %p947
      $region90: #{tpu_custom_call.1} parent=5 // pred_check_branch
        %950 = sbr.rel (%p948) target = $region92
      $region91: #{tpu_custom_call.1} parent=5 // pred_region
        %s951 = ssub.s32 %s27, 2
        // Predicated region
        $region93: #{tpu_custom_call.1} parent=91 // pred_check
          %p952 = pneg %p318
        $region94: #{tpu_custom_call.1} parent=91 // pred_check_branch
          %954 = sbr.rel (%p952) target = $region96
        $region95: #{tpu_custom_call.1} parent=91 // pred_region
          %s955 = sand.u32 %s303, 1
          %s956 = scalar_lea.sflag [#allocation4], %s955
          %s957 = sand.u32 %s303, 1
          %s958 = smul.addr %s957, 8
          %s959 = scalar_lea.vmem [#allocation11], %s958
          %960 = dma.done %s956, 128
        $region96: #{tpu_custom_call.1} parent=91 // pred_fallthru
          _
      $region92: #{tpu_custom_call.1} parent=5 // pred_fallthru
        _
    $region6: #{tpu_custom_call.1} parent=1 // loop_footer
      %s31 = sadd.s32 1, %s27
    $region7: #{tpu_custom_call.1} parent=1 // loop_footer_branch
      %26 = sbr.rel target = $region3
    $region8: #{tpu_custom_call.1} parent=1 // loop_exit
      _
    %961 = vsyncpa [#allocation3], 1
    %s962 = scalar_lea.sflag [#allocation3], 1
    %963 = vsyncpa %s962, 1
    %964 = vsyncpa [#allocation6], 1
    %s965 = scalar_lea.sflag [#allocation6], 1
    %966 = vsyncpa %s965, 1
    %967 = vsyncpa [#allocation9], 1
    %968 = vsyncpa [#allocation4], 1
    %s969 = scalar_lea.sflag [#allocation4], 1
    %970 = vsyncpa %s969, 1

</llo_original>
